<compile_context>
chip_gen: v7x
topology: tpu7x:2x2x1
jax: 0.10.0
libtpu: 0.0.40
codegen_flags: <defaults>
</compile_context>

<pallas_src>
import functools

import jax
import jax.numpy as jnp
from jax.experimental import pallas as pl
from jax.experimental.pallas import tpu as pltpu

_LANE = 128


def _rup(n, m=_LANE):
    return ((n + m - 1) // m) * m


def _pad2(a, rows, cols):
    r, c = a.shape
    return jnp.pad(a, ((0, rows - r), (0, cols - c)))


def _vae_kernel(x_ref, eps_ref,
                w1e_ref, b1e_ref, w2e_ref, b2e_ref,
                whead_ref, bhead_ref,
                w1d_ref, b1d_ref, w2d_ref, b2d_ref,
                wout_ref, bout_ref,
                head_ref, pred_ref):
    f32, bf16 = jnp.float32, jnp.bfloat16
    z_pad = whead_ref.shape[1] // 2          # static

    # ---- Encoder (bf16 MXU matmuls, f32 accumulation / bias / tanh) ----
    h1 = jnp.tanh(jnp.dot(x_ref[...], w1e_ref[...],
                          preferred_element_type=f32) + b1e_ref[...])
    h2 = jnp.tanh(jnp.dot(h1.astype(bf16), w2e_ref[...],
                          preferred_element_type=f32) + b2e_ref[...])

    # Fused mu/sd head: single (block_b, 2*z_pad) matmul + lane-dense store.
    head = jnp.dot(h2.astype(bf16), whead_ref[...],
                   preferred_element_type=f32) + bhead_ref[...]
    head_ref[...] = head.astype(head_ref.dtype)

    # ---- Reparameterize: z = mu + eps * exp(sd / 2)  (eps == 0 -> eval) ----
    z_mu = head[:, :z_pad]
    z_sd = head[:, z_pad:]
    z = z_mu + eps_ref[...] * jnp.exp(z_sd * 0.5)

    # ---- Decoder ----
    d1 = jnp.tanh(jnp.dot(z.astype(bf16), w1d_ref[...],
                          preferred_element_type=f32) + b1d_ref[...])
    d2 = jnp.tanh(jnp.dot(d1.astype(bf16), w2d_ref[...],
                          preferred_element_type=f32) + b2d_ref[...])
    pred = jnp.dot(d2.astype(bf16), wout_ref[...],
                   preferred_element_type=f32) + bout_ref[...]
    pred_ref[...] = pred.astype(pred_ref.dtype)


@functools.partial(jax.jit, static_argnames=("block_b",))
def vae_forward(x, params, eps=None, *, block_b=512):
    """x: (B, input_dim) f32.  params: PyTorch-convention weights.
    eps: optional (B, z_dim) standard-normal sample (training mode);
    eps=None -> eval mode (z = z_mu).
    Returns (generated_x, z_mu, z_sd)."""
    f32, bf16 = jnp.float32, jnp.bfloat16
    B, input_dim = x.shape
    h1_dim = params["e_w1"].shape[0]
    h2_dim = params["e_w2"].shape[0]
    z_dim = params["e_wmu"].shape[0]

    in_pad = _rup(input_dim)
    h1_pad = _rup(h1_dim)
    h2_pad = _rup(h2_dim)
    z_pad = _rup(z_dim)

    # ---- weight prep (transpose to (in, out), zero-pad to 128-lane multiples,
    #      cast to bf16; biases stay f32) ----
    w1e = _pad2(params["e_w1"].T, input_dim, h1_pad).astype(bf16)
    b1e = _pad2(params["e_b1"].reshape(1, -1), 1, h1_pad).astype(f32)
    w2e = _pad2(params["e_w2"].T, h1_pad, h2_pad).astype(bf16)
    b2e = _pad2(params["e_b2"].reshape(1, -1), 1, h2_pad).astype(f32)

    wmu = _pad2(params["e_wmu"].T, h2_pad, z_pad)
    wsd = _pad2(params["e_wsd"].T, h2_pad, z_pad)
    whead = jnp.concatenate([wmu, wsd], axis=1).astype(bf16)      # (h2_pad, 2*z_pad)
    bmu = _pad2(params["e_bmu"].reshape(1, -1), 1, z_pad)
    bsd = _pad2(params["e_bsd"].reshape(1, -1), 1, z_pad)
    bhead = jnp.concatenate([bmu, bsd], axis=1).astype(f32)

    w1d = _pad2(params["d_w1"].T, z_pad, h1_pad).astype(bf16)
    b1d = _pad2(params["d_b1"].reshape(1, -1), 1, h1_pad).astype(f32)
    w2d = _pad2(params["d_w2"].T, h1_pad, h2_pad).astype(bf16)
    b2d = _pad2(params["d_b2"].reshape(1, -1), 1, h2_pad).astype(f32)
    wout = _pad2(params["d_wout"].T, h2_pad, in_pad).astype(bf16)
    bout = _pad2(params["d_bout"].reshape(1, -1), 1, in_pad).astype(f32)

    x_bf = x.astype(bf16)
    if eps is None:
        # TODO(synk): in-kernel pltpu PRNG could sample eps, but it would not
        # match a host-side RNG reference; eval-mode uses z = z_mu.
        eps_p = jnp.zeros((B, z_pad), f32)
    else:
        eps_p = _pad2(eps.astype(f32), B, z_pad)

    # Batch tile: large (amortizes per-step overhead), but never larger than B.
    bb = min(block_b, B)
    grid = (pl.cdiv(B, bb),)

    x_spec = pl.BlockSpec((bb, input_dim), lambda i: (i, 0))
    eps_spec = pl.BlockSpec((bb, z_pad), lambda i: (i, 0))
    const = lambda a: pl.BlockSpec(a.shape, lambda i: (0, 0))

    out_shape = (
        jax.ShapeDtypeStruct((B, 2 * z_pad), f32),   # fused [mu | sd]
        jax.ShapeDtypeStruct((B, in_pad), f32),      # reconstruction (lane-padded)
    )
    out_specs = (
        pl.BlockSpec((bb, 2 * z_pad), lambda i: (i, 0)),
        pl.BlockSpec((bb, in_pad), lambda i: (i, 0)),
    )

    flops = 2 * B * (input_dim * h1_pad + h1_pad * h2_pad + h2_pad * 2 * z_pad
                     + z_pad * h1_pad + h1_pad * h2_pad + h2_pad * in_pad)
    transcendentals = B * (2 * (h1_pad + h2_pad) + z_pad)
    weight_bytes = 2 * (input_dim * h1_pad + 2 * h1_pad * h2_pad
                        + h2_pad * 2 * z_pad + z_pad * h1_pad + h2_pad * in_pad)
    bytes_accessed = (B * input_dim * 2 + B * z_pad * 4
                      + B * (2 * z_pad + in_pad) * 4 + weight_bytes)

    head_out, pred_out = pl.pallas_call(
        _vae_kernel,
        out_shape=out_shape,
        grid=grid,
        in_specs=[x_spec, eps_spec,
                  const(w1e), const(b1e), const(w2e), const(b2e),
                  const(whead), const(bhead),
                  const(w1d), const(b1d), const(w2d), const(b2d),
                  const(wout), const(bout)],
        out_specs=out_specs,
        compiler_params=pltpu.CompilerParams(
            dimension_semantics=("parallel",)),
        cost_estimate=pl.CostEstimate(flops=flops,
                                      transcendentals=transcendentals,
                                      bytes_accessed=bytes_accessed),
    )(x_bf, eps_p, w1e, b1e, w2e, b2e, whead, bhead,
      w1d, b1d, w2d, b2d, wout, bout)

    z_mu = head_out[:, :z_dim]
    z_sd = head_out[:, z_pad:z_pad + z_dim]
    generated_x = pred_out[:, :input_dim]
    return generated_x, z_mu, z_sd


def init_params(key, input_dim, hidden_dim1, hidden_dim2, z_dim):
    """nn.Linear-style init (uniform +-1/sqrt(fan_in)) for encoder + decoder."""
    def linear(k, out_f, in_f):
        kw, kb = jax.random.split(k)
        bound = 1.0 / jnp.sqrt(float(in_f))
        w = jax.random.uniform(kw, (out_f, in_f), jnp.float32, -bound, bound)
        b = jax.random.uniform(kb, (out_f,), jnp.float32, -bound, bound)
        return w, b

    ks = jax.random.split(key, 7)
    e_w1, e_b1 = linear(ks[0], hidden_dim1, input_dim)
    e_w2, e_b2 = linear(ks[1], hidden_dim2, hidden_dim1)
    e_wmu, e_bmu = linear(ks[2], z_dim, hidden_dim2)
    e_wsd, e_bsd = linear(ks[3], z_dim, hidden_dim2)
    d_w1, d_b1 = linear(ks[4], hidden_dim1, z_dim)
    d_w2, d_b2 = linear(ks[5], hidden_dim2, hidden_dim1)
    d_wout, d_bout = linear(ks[6], input_dim, hidden_dim2)
    return dict(e_w1=e_w1, e_b1=e_b1, e_w2=e_w2, e_b2=e_b2,
                e_wmu=e_wmu, e_bmu=e_bmu, e_wsd=e_wsd, e_bsd=e_bsd,
                d_w1=d_w1, d_b1=d_b1, d_w2=d_w2, d_b2=d_b2,
                d_wout=d_wout, d_bout=d_bout)


def vae_ref(x, p, eps, emulate_bf16=True):
    """Pure-JAX reference (PyTorch semantics). With emulate_bf16=True the matmul
    operands are rounded to bf16 (as the kernel does), so the comparison is tight."""
    cast = ((lambda a: a.astype(jnp.bfloat16).astype(jnp.float32))
            if emulate_bf16 else (lambda a: a))
    h1 = jnp.tanh(cast(x) @ cast(p["e_w1"].T) + p["e_b1"])
    h2 = jnp.tanh(cast(h1) @ cast(p["e_w2"].T) + p["e_b2"])
    z_mu = cast(h2) @ cast(p["e_wmu"].T) + p["e_bmu"]
    z_sd = cast(h2) @ cast(p["e_wsd"].T) + p["e_bsd"]
    z = z_mu + eps * jnp.exp(z_sd / 2)
    d1 = jnp.tanh(cast(z) @ cast(p["d_w1"].T) + p["d_b1"])
    d2 = jnp.tanh(cast(d1) @ cast(p["d_w2"].T) + p["d_b2"])
    pred = cast(d2) @ cast(p["d_wout"].T) + p["d_bout"]
    return pred, z_mu, z_sd


if __name__ == "__main__":
    key = jax.random.PRNGKey(0)
    kx, kp, ke = jax.random.split(key, 3)

    B, input_dim, hidden_dim1, hidden_dim2, z_dim = 16, 16, 32, 32, 8
    x = jax.random.normal(kx, (B, input_dim), jnp.float32)
    params = init_params(kp, input_dim, hidden_dim1, hidden_dim2, z_dim)
    eps = jax.random.normal(ke, (B, z_dim), jnp.float32)   # training-mode sample

    # Training-mode forward (reparameterized with externally supplied eps).
    gen_x, z_mu, z_sd = vae_forward(x, params, eps)
    jax.block_until_ready((gen_x, z_mu, z_sd))

    assert gen_x.shape == (B, input_dim)
    assert z_mu.shape == (B, z_dim) and z_sd.shape == (B, z_dim)

    ref_gx, ref_mu, ref_sd = vae_ref(x, params, eps)
    assert jnp.allclose(z_mu, ref_mu, atol=2e-3, rtol=2e-3)
    assert jnp.allclose(z_sd, ref_sd, atol=2e-3, rtol=2e-3)
    assert jnp.allclose(gen_x, ref_gx, atol=2e-3, rtol=2e-3)

    # Eval-mode forward (z = z_mu).
    gen_x_e, z_mu_e, z_sd_e = vae_forward(x, params)
    jax.block_until_ready((gen_x_e, z_mu_e, z_sd_e))
    ref_gx_e, _, _ = vae_ref(x, params, jnp.zeros((B, z_dim), jnp.float32))
    assert jnp.allclose(gen_x_e, ref_gx_e, atol=2e-3, rtol=2e-3)

    print("KERNEL_OK")
</pallas_src>

<mosaic_0001>
module attributes {stable_mosaic.version = 11 : i64} {
  func.func @_vae_kernel(%arg0: i32, %arg1: memref<16x16xbf16, #tpu.memory_space<vmem>>, %arg2: memref<16x128xf32, #tpu.memory_space<vmem>>, %arg3: memref<16x128xbf16, #tpu.memory_space<vmem>>, %arg4: memref<1x128xf32, #tpu.memory_space<vmem>>, %arg5: memref<128x128xbf16, #tpu.memory_space<vmem>>, %arg6: memref<1x128xf32, #tpu.memory_space<vmem>>, %arg7: memref<128x256xbf16, #tpu.memory_space<vmem>>, %arg8: memref<1x256xf32, #tpu.memory_space<vmem>>, %arg9: memref<128x128xbf16, #tpu.memory_space<vmem>>, %arg10: memref<1x128xf32, #tpu.memory_space<vmem>>, %arg11: memref<128x128xbf16, #tpu.memory_space<vmem>>, %arg12: memref<1x128xf32, #tpu.memory_space<vmem>>, %arg13: memref<128x128xbf16, #tpu.memory_space<vmem>>, %arg14: memref<1x128xf32, #tpu.memory_space<vmem>>, %arg15: memref<16x256xf32, #tpu.memory_space<vmem>>, %arg16: memref<16x128xf32, #tpu.memory_space<vmem>>) attributes {dimension_semantics = [#tpu.dimension_semantics<parallel>], iteration_bounds = array<i64: 1>, scalar_prefetch = 0 : i64, scratch_operands = 0 : i64, tpu.core_type = #tpu.core_type<tc>, window_params = [{transform_indices = @transform_0, window_bounds = array<i64: 16, 16>}, {transform_indices = @transform_1, window_bounds = array<i64: 16, 128>}, {pipeline_mode = #tpu.pipeline_mode<synchronous>, transform_indices = @transform_2, window_bounds = array<i64: 16, 128>}, {pipeline_mode = #tpu.pipeline_mode<synchronous>, transform_indices = @transform_3, window_bounds = array<i64: 1, 128>}, {pipeline_mode = #tpu.pipeline_mode<synchronous>, transform_indices = @transform_4, window_bounds = array<i64: 128, 128>}, {pipeline_mode = #tpu.pipeline_mode<synchronous>, transform_indices = @transform_5, window_bounds = array<i64: 1, 128>}, {pipeline_mode = #tpu.pipeline_mode<synchronous>, transform_indices = @transform_6, window_bounds = array<i64: 128, 256>}, {pipeline_mode = #tpu.pipeline_mode<synchronous>, transform_indices = @transform_7, window_bounds = array<i64: 1, 256>}, {pipeline_mode = #tpu.pipeline_mode<synchronous>, transform_indices = @transform_8, window_bounds = array<i64: 128, 128>}, {pipeline_mode = #tpu.pipeline_mode<synchronous>, transform_indices = @transform_9, window_bounds = array<i64: 1, 128>}, {pipeline_mode = #tpu.pipeline_mode<synchronous>, transform_indices = @transform_10, window_bounds = array<i64: 128, 128>}, {pipeline_mode = #tpu.pipeline_mode<synchronous>, transform_indices = @transform_11, window_bounds = array<i64: 1, 128>}, {pipeline_mode = #tpu.pipeline_mode<synchronous>, transform_indices = @transform_12, window_bounds = array<i64: 128, 128>}, {pipeline_mode = #tpu.pipeline_mode<synchronous>, transform_indices = @transform_13, window_bounds = array<i64: 1, 128>}, {transform_indices = @transform_14, window_bounds = array<i64: 16, 256>}, {transform_indices = @transform_15, window_bounds = array<i64: 16, 128>}]} {
    %c0 = arith.constant 0 : index
    %c0_0 = arith.constant 0 : index
    %0 = vector.load %arg1[%c0, %c0_0] : memref<16x16xbf16, #tpu.memory_space<vmem>>, vector<16x16xbf16>
    %c0_1 = arith.constant 0 : index
    %c0_2 = arith.constant 0 : index
    %1 = vector.load %arg3[%c0_1, %c0_2] : memref<16x128xbf16, #tpu.memory_space<vmem>>, vector<16x128xbf16>
    %cst = arith.constant dense<0.000000e+00> : vector<16x128xf32>
    %2 = tpu.matmul %0, %1, %cst {dimension_numbers = #tpu.dot_dimension_numbers<[1], [0], [0], [1], [0, 0, 1, 1], [], []>} : vector<16x16xbf16>, vector<16x128xbf16>, vector<16x128xf32> -> vector<16x128xf32>
    %c0_3 = arith.constant 0 : index
    %c0_4 = arith.constant 0 : index
    %3 = vector.load %arg4[%c0_3, %c0_4] : memref<1x128xf32, #tpu.memory_space<vmem>>, vector<1x128xf32>
    %4 = vector.broadcast %3 : vector<1x128xf32> to vector<16x128xf32>
    %5 = arith.addf %2, %4 : vector<16x128xf32>
    %6 = math.tanh %5 : vector<16x128xf32>
    %7 = arith.truncf %6 : vector<16x128xf32> to vector<16x128xbf16>
    %c0_5 = arith.constant 0 : index
    %c0_6 = arith.constant 0 : index
    %8 = vector.load %arg5[%c0_5, %c0_6] : memref<128x128xbf16, #tpu.memory_space<vmem>>, vector<128x128xbf16>
    %cst_7 = arith.constant dense<0.000000e+00> : vector<16x128xf32>
    %9 = tpu.matmul %7, %8, %cst_7 {dimension_numbers = #tpu.dot_dimension_numbers<[1], [0], [0], [1], [0, 0, 1, 1], [], []>} : vector<16x128xbf16>, vector<128x128xbf16>, vector<16x128xf32> -> vector<16x128xf32>
    %c0_8 = arith.constant 0 : index
    %c0_9 = arith.constant 0 : index
    %10 = vector.load %arg6[%c0_8, %c0_9] : memref<1x128xf32, #tpu.memory_space<vmem>>, vector<1x128xf32>
    %11 = vector.broadcast %10 : vector<1x128xf32> to vector<16x128xf32>
    %12 = arith.addf %9, %11 : vector<16x128xf32>
    %13 = math.tanh %12 : vector<16x128xf32>
    %14 = arith.truncf %13 : vector<16x128xf32> to vector<16x128xbf16>
    %c0_10 = arith.constant 0 : index
    %c0_11 = arith.constant 0 : index
    %15 = vector.load %arg7[%c0_10, %c0_11] : memref<128x256xbf16, #tpu.memory_space<vmem>>, vector<128x256xbf16>
    %cst_12 = arith.constant dense<0.000000e+00> : vector<16x256xf32>
    %16 = tpu.matmul %14, %15, %cst_12 {dimension_numbers = #tpu.dot_dimension_numbers<[1], [0], [0], [1], [0, 0, 1, 1], [], []>} : vector<16x128xbf16>, vector<128x256xbf16>, vector<16x256xf32> -> vector<16x256xf32>
    %c0_13 = arith.constant 0 : index
    %c0_14 = arith.constant 0 : index
    %17 = vector.load %arg8[%c0_13, %c0_14] : memref<1x256xf32, #tpu.memory_space<vmem>>, vector<1x256xf32>
    %18 = vector.broadcast %17 : vector<1x256xf32> to vector<16x256xf32>
    %19 = arith.addf %16, %18 : vector<16x256xf32>
    %c0_15 = arith.constant 0 : index
    %c0_16 = arith.constant 0 : index
    %20 = vector.load %arg15[%c0_15, %c0_16] : memref<16x256xf32, #tpu.memory_space<vmem>>, vector<16x256xf32>
    tpu.vector_store %arg15[%c0_15, %c0_16], %19 {strides = array<i32>} : memref<16x256xf32, #tpu.memory_space<vmem>>, vector<16x256xf32>,
    %21 = vector.extract_strided_slice %19 {offsets = [0, 0], sizes = [16, 128], strides = [1, 1]} : vector<16x256xf32> to vector<16x128xf32>
    %22 = vector.extract_strided_slice %19 {offsets = [0, 128], sizes = [16, 128], strides = [1, 1]} : vector<16x256xf32> to vector<16x128xf32>
    %c0_17 = arith.constant 0 : index
    %c0_18 = arith.constant 0 : index
    %23 = vector.load %arg2[%c0_17, %c0_18] : memref<16x128xf32, #tpu.memory_space<vmem>>, vector<16x128xf32>
    %cst_19 = arith.constant 5.000000e-01 : f32
    %24 = vector.broadcast %cst_19 : f32 to vector<16x128xf32>
    %25 = arith.mulf %22, %24 : vector<16x128xf32>
    %26 = math.exp %25 : vector<16x128xf32>
    %27 = arith.mulf %23, %26 : vector<16x128xf32>
    %28 = arith.addf %21, %27 : vector<16x128xf32>
    %29 = arith.truncf %28 : vector<16x128xf32> to vector<16x128xbf16>
    %c0_20 = arith.constant 0 : index
    %c0_21 = arith.constant 0 : index
    %30 = vector.load %arg9[%c0_20, %c0_21] : memref<128x128xbf16, #tpu.memory_space<vmem>>, vector<128x128xbf16>
    %cst_22 = arith.constant dense<0.000000e+00> : vector<16x128xf32>
    %31 = tpu.matmul %29, %30, %cst_22 {dimension_numbers = #tpu.dot_dimension_numbers<[1], [0], [0], [1], [0, 0, 1, 1], [], []>} : vector<16x128xbf16>, vector<128x128xbf16>, vector<16x128xf32> -> vector<16x128xf32>
    %c0_23 = arith.constant 0 : index
    %c0_24 = arith.constant 0 : index
    %32 = vector.load %arg10[%c0_23, %c0_24] : memref<1x128xf32, #tpu.memory_space<vmem>>, vector<1x128xf32>
    %33 = vector.broadcast %32 : vector<1x128xf32> to vector<16x128xf32>
    %34 = arith.addf %31, %33 : vector<16x128xf32>
    %35 = math.tanh %34 : vector<16x128xf32>
    %36 = arith.truncf %35 : vector<16x128xf32> to vector<16x128xbf16>
    %c0_25 = arith.constant 0 : index
    %c0_26 = arith.constant 0 : index
    %37 = vector.load %arg11[%c0_25, %c0_26] : memref<128x128xbf16, #tpu.memory_space<vmem>>, vector<128x128xbf16>
    %cst_27 = arith.constant dense<0.000000e+00> : vector<16x128xf32>
    %38 = tpu.matmul %36, %37, %cst_27 {dimension_numbers = #tpu.dot_dimension_numbers<[1], [0], [0], [1], [0, 0, 1, 1], [], []>} : vector<16x128xbf16>, vector<128x128xbf16>, vector<16x128xf32> -> vector<16x128xf32>
    %c0_28 = arith.constant 0 : index
    %c0_29 = arith.constant 0 : index
    %39 = vector.load %arg12[%c0_28, %c0_29] : memref<1x128xf32, #tpu.memory_space<vmem>>, vector<1x128xf32>
    %40 = vector.broadcast %39 : vector<1x128xf32> to vector<16x128xf32>
    %41 = arith.addf %38, %40 : vector<16x128xf32>
    %42 = math.tanh %41 : vector<16x128xf32>
    %43 = arith.truncf %42 : vector<16x128xf32> to vector<16x128xbf16>
    %c0_30 = arith.constant 0 : index
    %c0_31 = arith.constant 0 : index
    %44 = vector.load %arg13[%c0_30, %c0_31] : memref<128x128xbf16, #tpu.memory_space<vmem>>, vector<128x128xbf16>
    %cst_32 = arith.constant dense<0.000000e+00> : vector<16x128xf32>
    %45 = tpu.matmul %43, %44, %cst_32 {dimension_numbers = #tpu.dot_dimension_numbers<[1], [0], [0], [1], [0, 0, 1, 1], [], []>} : vector<16x128xbf16>, vector<128x128xbf16>, vector<16x128xf32> -> vector<16x128xf32>
    %c0_33 = arith.constant 0 : index
    %c0_34 = arith.constant 0 : index
    %46 = vector.load %arg14[%c0_33, %c0_34] : memref<1x128xf32, #tpu.memory_space<vmem>>, vector<1x128xf32>
    %47 = vector.broadcast %46 : vector<1x128xf32> to vector<16x128xf32>
    %48 = arith.addf %45, %47 : vector<16x128xf32>
    %c0_35 = arith.constant 0 : index
    %c0_36 = arith.constant 0 : index
    %49 = vector.load %arg16[%c0_35, %c0_36] : memref<16x128xf32, #tpu.memory_space<vmem>>, vector<16x128xf32>
    tpu.vector_store %arg16[%c0_35, %c0_36], %48 {strides = array<i32>} : memref<16x128xf32, #tpu.memory_space<vmem>>, vector<16x128xf32>,
    return
  }
  func.func @transform_0(%arg0: i32) -> (i32, i32) {
    %c0_i32 = arith.constant 0 : i32
    %c0_i32_0 = arith.constant 0 : i32
    return %arg0, %c0_i32 : i32, i32
  }
  func.func @transform_1(%arg0: i32) -> (i32, i32) {
    %c0_i32 = arith.constant 0 : i32
    %c0_i32_0 = arith.constant 0 : i32
    return %arg0, %c0_i32 : i32, i32
  }
  func.func @transform_2(%arg0: i32) -> (i32, i32) {
    %c0_i32 = arith.constant 0 : i32
    %c0_i32_0 = arith.constant 0 : i32
    %c0_i32_1 = arith.constant 0 : i32
    return %c0_i32, %c0_i32_0 : i32, i32
  }
  func.func @transform_3(%arg0: i32) -> (i32, i32) {
    %c0_i32 = arith.constant 0 : i32
    %c0_i32_0 = arith.constant 0 : i32
    %c0_i32_1 = arith.constant 0 : i32
    return %c0_i32, %c0_i32_0 : i32, i32
  }
  func.func @transform_4(%arg0: i32) -> (i32, i32) {
    %c0_i32 = arith.constant 0 : i32
    %c0_i32_0 = arith.constant 0 : i32
    %c0_i32_1 = arith.constant 0 : i32
    return %c0_i32, %c0_i32_0 : i32, i32
  }
  func.func @transform_5(%arg0: i32) -> (i32, i32) {
    %c0_i32 = arith.constant 0 : i32
    %c0_i32_0 = arith.constant 0 : i32
    %c0_i32_1 = arith.constant 0 : i32
    return %c0_i32, %c0_i32_0 : i32, i32
  }
  func.func @transform_6(%arg0: i32) -> (i32, i32) {
    %c0_i32 = arith.constant 0 : i32
    %c0_i32_0 = arith.constant 0 : i32
    %c0_i32_1 = arith.constant 0 : i32
    return %c0_i32, %c0_i32_0 : i32, i32
  }
  func.func @transform_7(%arg0: i32) -> (i32, i32) {
    %c0_i32 = arith.constant 0 : i32
    %c0_i32_0 = arith.constant 0 : i32
    %c0_i32_1 = arith.constant 0 : i32
    return %c0_i32, %c0_i32_0 : i32, i32
  }
  func.func @transform_8(%arg0: i32) -> (i32, i32) {
    %c0_i32 = arith.constant 0 : i32
    %c0_i32_0 = arith.constant 0 : i32
    %c0_i32_1 = arith.constant 0 : i32
    return %c0_i32, %c0_i32_0 : i32, i32
  }
  func.func @transform_9(%arg0: i32) -> (i32, i32) {
    %c0_i32 = arith.constant 0 : i32
    %c0_i32_0 = arith.constant 0 : i32
    %c0_i32_1 = arith.constant 0 : i32
    return %c0_i32, %c0_i32_0 : i32, i32
  }
  func.func @transform_10(%arg0: i32) -> (i32, i32) {
    %c0_i32 = arith.constant 0 : i32
    %c0_i32_0 = arith.constant 0 : i32
    %c0_i32_1 = arith.constant 0 : i32
    return %c0_i32, %c0_i32_0 : i32, i32
  }
  func.func @transform_11(%arg0: i32) -> (i32, i32) {
    %c0_i32 = arith.constant 0 : i32
    %c0_i32_0 = arith.constant 0 : i32
    %c0_i32_1 = arith.constant 0 : i32
    return %c0_i32, %c0_i32_0 : i32, i32
  }
  func.func @transform_12(%arg0: i32) -> (i32, i32) {
    %c0_i32 = arith.constant 0 : i32
    %c0_i32_0 = arith.constant 0 : i32
    %c0_i32_1 = arith.constant 0 : i32
    return %c0_i32, %c0_i32_0 : i32, i32
  }
  func.func @transform_13(%arg0: i32) -> (i32, i32) {
    %c0_i32 = arith.constant 0 : i32
    %c0_i32_0 = arith.constant 0 : i32
    %c0_i32_1 = arith.constant 0 : i32
    return %c0_i32, %c0_i32_0 : i32, i32
  }
  func.func @transform_14(%arg0: i32) -> (i32, i32) {
    %c0_i32 = arith.constant 0 : i32
    %c0_i32_0 = arith.constant 0 : i32
    return %arg0, %c0_i32 : i32, i32
  }
  func.func @transform_15(%arg0: i32) -> (i32, i32) {
    %c0_i32 = arith.constant 0 : i32
    %c0_i32_0 = arith.constant 0 : i32
    return %arg0, %c0_i32 : i32, i32
  }
}

</mosaic_0001>

<llo_original>
// kernel: vae_forward.1
$region0: #{vae_forward.1}
  #allocation0 [shape = 'u32[]', space=smem, size = 0x4, offset = 0x4, fixed_abs, tag = 'smem constant byte address 0x4 - core index']
  #allocation1 [shape = 'u32[144,128]{1,0:T(1,128)}', space=vmem, size = 0x12000, scoped, tag = 'internal scratch']
  %s0 = inlined_call_operand.vmem [shape: bf16[16,16], index: 0, kind: input, shape index: {}]
  %s1 = inlined_call_operand.vmem [shape: f32[16,128], index: 1, kind: input, shape index: {}]
  %s2 = inlined_call_operand.vmem [shape: bf16[16,128], index: 2, kind: input, shape index: {}]
  %s3 = inlined_call_operand.vmem [shape: f32[1,128], index: 3, kind: input, shape index: {}]
  %s4 = inlined_call_operand.vmem [shape: bf16[128,128], index: 4, kind: input, shape index: {}]
  %s5 = inlined_call_operand.vmem [shape: f32[1,128], index: 5, kind: input, shape index: {}]
  %s6 = inlined_call_operand.vmem [shape: bf16[128,256], index: 6, kind: input, shape index: {}]
  %s7 = inlined_call_operand.vmem [shape: f32[1,256], index: 7, kind: input, shape index: {}]
  %s8 = inlined_call_operand.vmem [shape: bf16[128,128], index: 8, kind: input, shape index: {}]
  %s9 = inlined_call_operand.vmem [shape: f32[1,128], index: 9, kind: input, shape index: {}]
  %s10 = inlined_call_operand.vmem [shape: bf16[128,128], index: 10, kind: input, shape index: {}]
  %s11 = inlined_call_operand.vmem [shape: f32[1,128], index: 11, kind: input, shape index: {}]
  %s12 = inlined_call_operand.vmem [shape: bf16[128,128], index: 12, kind: input, shape index: {}]
  %s13 = inlined_call_operand.vmem [shape: f32[1,128], index: 13, kind: input, shape index: {}]
  %s14 = inlined_call_operand.vmem [shape: f32[16,256], index: 14, kind: output, shape index: {0}]
  %s15 = inlined_call_operand.hbm [shape: f32[16,128], index: 15, kind: output, shape index: {1}]
  %16 = xla_tuple %s14, %s15
  %s17 = sld [smem:[#allocation0]]
  $region74: #{vae_forward.1} parent=0
    _
  %s19 = ssub.s32 1, %s17
  %s20 = scalar_select 0, %s19, %s17
  $region1: #{vae_forward.1} parent=0
    #allocation2 [shape = 'u8[8192]{0}', space=vmem, size = 0x2000, scoped, tag = 'output window, operand 1, single buffered']
    #allocation3 [shape = 's32[1]{0}', space=sflag, size = 0x4, scoped, tag = 'scoped memory for vae_forward.1']
    %21 = vsyncpa [#allocation3], 0
    // Predicated region
    $region2: #{vae_forward.1} parent=1 // pred_check
      _
    $region3: #{vae_forward.1} parent=1 // pred_check_branch
      %23 = sbr.rel (0) target = $region5
    $region4: #{vae_forward.1} parent=1 // pred_region
      _
    $region5: #{vae_forward.1} parent=1 // pred_fallthru
      _
    // Predicated region
    $region6: #{vae_forward.1} parent=1 // pred_check
      _
    $region7: #{vae_forward.1} parent=1 // pred_check_branch
      %25 = sbr.rel (0) target = $region9
    $region8: #{vae_forward.1} parent=1 // pred_region
      _
    $region9: #{vae_forward.1} parent=1 // pred_fallthru
      _
    // Predicated region
    $region10: #{vae_forward.1} parent=1 // pred_check
      _
    $region11: #{vae_forward.1} parent=1 // pred_check_branch
      %27 = sbr.rel (0) target = $region13
    $region12: #{vae_forward.1} parent=1 // pred_region
      _
    $region13: #{vae_forward.1} parent=1 // pred_fallthru
      _
    // Predicated region
    $region14: #{vae_forward.1} parent=1 // pred_check
      _
    $region15: #{vae_forward.1} parent=1 // pred_check_branch
      %29 = sbr.rel (0) target = $region17
    $region16: #{vae_forward.1} parent=1 // pred_region
      _
    $region17: #{vae_forward.1} parent=1 // pred_fallthru
      _
    // Predicated region
    $region18: #{vae_forward.1} parent=1 // pred_check
      _
    $region19: #{vae_forward.1} parent=1 // pred_check_branch
      %31 = sbr.rel (0) target = $region21
    $region20: #{vae_forward.1} parent=1 // pred_region
      _
    $region21: #{vae_forward.1} parent=1 // pred_fallthru
      _
    // Predicated region
    $region22: #{vae_forward.1} parent=1 // pred_check
      _
    $region23: #{vae_forward.1} parent=1 // pred_check_branch
      %33 = sbr.rel (0) target = $region25
    $region24: #{vae_forward.1} parent=1 // pred_region
      _
    $region25: #{vae_forward.1} parent=1 // pred_fallthru
      _
    // Predicated region
    $region26: #{vae_forward.1} parent=1 // pred_check
      _
    $region27: #{vae_forward.1} parent=1 // pred_check_branch
      %35 = sbr.rel (0) target = $region29
    $region28: #{vae_forward.1} parent=1 // pred_region
      _
    $region29: #{vae_forward.1} parent=1 // pred_fallthru
      _
    // Predicated region
    $region30: #{vae_forward.1} parent=1 // pred_check
      _
    $region31: #{vae_forward.1} parent=1 // pred_check_branch
      %37 = sbr.rel (0) target = $region33
    $region32: #{vae_forward.1} parent=1 // pred_region
      _
    $region33: #{vae_forward.1} parent=1 // pred_fallthru
      _
    // Predicated region
    $region34: #{vae_forward.1} parent=1 // pred_check
      _
    $region35: #{vae_forward.1} parent=1 // pred_check_branch
      %39 = sbr.rel (0) target = $region37
    $region36: #{vae_forward.1} parent=1 // pred_region
      _
    $region37: #{vae_forward.1} parent=1 // pred_fallthru
      _
    // Predicated region
    $region38: #{vae_forward.1} parent=1 // pred_check
      _
    $region39: #{vae_forward.1} parent=1 // pred_check_branch
      %41 = sbr.rel (0) target = $region41
    $region40: #{vae_forward.1} parent=1 // pred_region
      _
    $region41: #{vae_forward.1} parent=1 // pred_fallthru
      _
    // Predicated region
    $region42: #{vae_forward.1} parent=1 // pred_check
      _
    $region43: #{vae_forward.1} parent=1 // pred_check_branch
      %43 = sbr.rel (0) target = $region45
    $region44: #{vae_forward.1} parent=1 // pred_region
      _
    $region45: #{vae_forward.1} parent=1 // pred_fallthru
      _
    // Predicated region
    $region46: #{vae_forward.1} parent=1 // pred_check
      _
    $region47: #{vae_forward.1} parent=1 // pred_check_branch
      %45 = sbr.rel (0) target = $region49
    $region48: #{vae_forward.1} parent=1 // pred_region
      _
    $region49: #{vae_forward.1} parent=1 // pred_fallthru
      _
    // Predicated region
    $region50: #{vae_forward.1} parent=1 // pred_check
      _
    $region51: #{vae_forward.1} parent=1 // pred_check_branch
      %47 = sbr.rel (0) target = $region53
    $region52: #{vae_forward.1} parent=1 // pred_region
      _
    $region53: #{vae_forward.1} parent=1 // pred_fallthru
      _
    // Predicated region
    $region54: #{vae_forward.1} parent=1 // pred_check
      _
    $region55: #{vae_forward.1} parent=1 // pred_check_branch
      %49 = sbr.rel (0) target = $region57
    $region56: #{vae_forward.1} parent=1 // pred_region
      _
    $region57: #{vae_forward.1} parent=1 // pred_fallthru
      _
    %v51 = vld [vmem:[%s0] sm:$0xf]
    %v52 = vld [vmem:[%s0 + $0x4] sm:$0xf]
    %v53 = vld [vmem:[%s2] sm:$0xf]
    %v54 = vld [vmem:[%s2 + $0x4] sm:$0xf]
    %v55 = vld [vmem:[%s3] sm:$0x1]
    %v57 = vlaneseq
    %v58 = vshrl.u32 %v57, 7
    %v59 = vsub.s32 0, %v58
    %v60 = vrot.slane %v55, %v59
    %v64 = vunpack.c.l.b16 %v51
    %v65 = vunpack.c.l.b16 %v52
    %v66 = vpack.c.b16 %v65, %v64
    %v69 = vunpack.c.l.b16 %v53
    %v70 = vunpack.c.l.b16 %v54
    %v71 = vpack.c.b16 %v70, %v69
    %vm73 = vcmask 130048
    %v75 = vsel %vm73, %v66, 0
    %77 = vmatprep.subr.bf16.mxu0 0
    %78 = vmatpush1.bf16.msra.mxu0 %v71
    %79 = vmatprep.subr.bf16.mxu0 0
    %80 = vmatpush1.bf16.msra.mxu0 0
    %81 = vmatprep.subr.bf16.mxu0 0
    %82 = vmatpush1.bf16.msra.mxu0 0
    %83 = vmatprep.subr.bf16.mxu0 0
    %84 = vmatpush1.bf16.msra.mxu0 0
    %85 = vmatprep.subr.bf16.mxu0 0
    %86 = vmatpush1.bf16.msra.mxu0 0
    %87 = vmatprep.subr.bf16.mxu0 0
    %88 = vmatpush1.bf16.msra.mxu0 0
    %89 = vmatprep.subr.bf16.mxu0 0
    %90 = vmatpush1.bf16.msra.mxu0 0
    %91 = vmatprep.subr.bf16.mxu0 0
    %92 = vmatpush1.bf16.msra.mxu0 0
    %93 = vmatprep.subr.bf16.mxu0 0
    %94 = vmatpush1.bf16.msra.mxu0 0
    %95 = vmatprep.subr.bf16.mxu0 0
    %96 = vmatpush1.bf16.msra.mxu0 0
    %97 = vmatprep.subr.bf16.mxu0 0
    %98 = vmatpush1.bf16.msra.mxu0 0
    %99 = vmatprep.subr.bf16.mxu0 0
    %100 = vmatpush1.bf16.msra.mxu0 0
    %101 = vmatprep.subr.bf16.mxu0 0
    %102 = vmatpush1.bf16.msra.mxu0 0
    %103 = vmatprep.subr.bf16.mxu0 0
    %104 = vmatpush1.bf16.msra.mxu0 0
    %105 = vmatprep.subr.bf16.mxu0 0
    %106 = vmatpush1.bf16.msra.mxu0 0
    %107 = vmatprep.subr.bf16.mxu0 0
    %108 = vmatpush1.bf16.msra.mxu0 0
    %109 = vmatprep.mubr.bf16.mxu0 0
    %110 = vmatmul.mubr.bf16.gmra.mrb[0].mxu0 %v75
    %v111 = vpop.f32.mrb[0].mxu0
    %v112 = vadd.f32 %v60, %v111
    %v113 = vpop.f32.mrb[0].mxu0
    %v114 = vpop.f32.mrb[0].mxu0
    %v115 = vadd.f32 %v60, %v114
    %v116 = vpop.f32.mrb[0].mxu0
    %117 = vdwg.mxu0
    %v118 = vtanh.pop %v112
    %v119 = vtanh.pop %v115
    %v120 = vpack.c.bf16 %v119, %v118
    %v121 = vld [vmem:[%s4] sm:$0xf]
    %v122 = vld [vmem:[%s4 + $0x4] sm:$0xf]
    %v123 = vld [vmem:[%s4 + $0x8] sm:$0xf]
    %v124 = vld [vmem:[%s4 + $0xc] sm:$0xf]
    %v125 = vld [vmem:[%s4 + $0x10] sm:$0xf]
    %v126 = vld [vmem:[%s4 + $0x14] sm:$0xf]
    %v127 = vld [vmem:[%s4 + $0x18] sm:$0xf]
    %v128 = vld [vmem:[%s4 + $0x1c] sm:$0xf]
    %v129 = vld [vmem:[%s4 + $0x20] sm:$0xf]
    %v130 = vld [vmem:[%s4 + $0x24] sm:$0xf]
    %v131 = vld [vmem:[%s4 + $0x28] sm:$0xf]
    %v132 = vld [vmem:[%s4 + $0x2c] sm:$0xf]
    %v133 = vld [vmem:[%s4 + $0x30] sm:$0xf]
    %v134 = vld [vmem:[%s4 + $0x34] sm:$0xf]
    %v135 = vld [vmem:[%s4 + $0x38] sm:$0xf]
    %v136 = vld [vmem:[%s4 + $0x3c] sm:$0xf]
    %v137 = vld [vmem:[%s5] sm:$0x1]
    %v139 = vlaneseq
    %v140 = vshrl.u32 %v139, 7
    %v141 = vsub.s32 0, %v140
    %v142 = vrot.slane %v137, %v141
    %v160 = vunpack.c.l.b16 %v121
    %v161 = vunpack.c.l.b16 %v122
    %v162 = vunpack.c.l.b16 %v123
    %v163 = vunpack.c.l.b16 %v124
    %v164 = vunpack.c.l.b16 %v125
    %v165 = vunpack.c.l.b16 %v126
    %v166 = vunpack.c.l.b16 %v127
    %v167 = vunpack.c.l.b16 %v128
    %v168 = vunpack.c.l.b16 %v129
    %v169 = vunpack.c.l.b16 %v130
    %v170 = vunpack.c.l.b16 %v131
    %v171 = vunpack.c.l.b16 %v132
    %v172 = vunpack.c.l.b16 %v133
    %v173 = vunpack.c.l.b16 %v134
    %v174 = vunpack.c.l.b16 %v135
    %v175 = vunpack.c.l.b16 %v136
    %v176 = vpack.c.b16 %v161, %v160
    %v177 = vpack.c.b16 %v163, %v162
    %v178 = vpack.c.b16 %v165, %v164
    %v179 = vpack.c.b16 %v167, %v166
    %v180 = vpack.c.b16 %v169, %v168
    %v181 = vpack.c.b16 %v171, %v170
    %v182 = vpack.c.b16 %v173, %v172
    %v183 = vpack.c.b16 %v175, %v174
    %192 = vmatprep.subr.bf16.mxu0 0
    %193 = vmatpush1.bf16.msra.mxu0 %v176
    %194 = vmatprep.subr.bf16.mxu0 0
    %195 = vmatpush1.bf16.msra.mxu0 %v177
    %196 = vmatprep.subr.bf16.mxu0 0
    %197 = vmatpush1.bf16.msra.mxu0 %v178
    %198 = vmatprep.subr.bf16.mxu0 0
    %199 = vmatpush1.bf16.msra.mxu0 %v179
    %200 = vmatprep.subr.bf16.mxu0 0
    %201 = vmatpush1.bf16.msra.mxu0 %v180
    %202 = vmatprep.subr.bf16.mxu0 0
    %203 = vmatpush1.bf16.msra.mxu0 %v181
    %204 = vmatprep.subr.bf16.mxu0 0
    %205 = vmatpush1.bf16.msra.mxu0 %v182
    %206 = vmatprep.subr.bf16.mxu0 0
    %207 = vmatpush1.bf16.msra.mxu0 %v183
    %208 = vmatprep.subr.bf16.mxu0 0
    %209 = vmatpush1.bf16.msra.mxu0 0
    %210 = vmatprep.subr.bf16.mxu0 0
    %211 = vmatpush1.bf16.msra.mxu0 0
    %212 = vmatprep.subr.bf16.mxu0 0
    %213 = vmatpush1.bf16.msra.mxu0 0
    %214 = vmatprep.subr.bf16.mxu0 0
    %215 = vmatpush1.bf16.msra.mxu0 0
    %216 = vmatprep.subr.bf16.mxu0 0
    %217 = vmatpush1.bf16.msra.mxu0 0
    %218 = vmatprep.subr.bf16.mxu0 0
    %219 = vmatpush1.bf16.msra.mxu0 0
    %220 = vmatprep.subr.bf16.mxu0 0
    %221 = vmatpush1.bf16.msra.mxu0 0
    %222 = vmatprep.subr.bf16.mxu0 0
    %223 = vmatpush1.bf16.msra.mxu0 0
    %224 = vmatprep.mubr.bf16.mxu0 0
    %225 = vmatmul.mubr.bf16.gmra.mrb[0].mxu0 %v120
    %v226 = vpop.f32.mrb[0].mxu0
    %v227 = vadd.f32 %v142, %v226
    %v228 = vpop.f32.mrb[0].mxu0
    %v229 = vpop.f32.mrb[0].mxu0
    %v230 = vadd.f32 %v142, %v229
    %v231 = vpop.f32.mrb[0].mxu0
    %232 = vdwg.mxu0
    %v233 = vtanh.pop %v227
    %v234 = vtanh.pop %v230
    %v235 = vpack.c.bf16 %v234, %v233
    %v236 = vld [vmem:[%s6] sm:$0xff]
    %v237 = vld [vmem:[%s6 + $0x8] sm:$0xff]
    %v238 = vld [vmem:[%s6 + $0x10] sm:$0xff]
    %v239 = vld [vmem:[%s6 + $0x18] sm:$0xff]
    %v240 = vld [vmem:[%s6 + $0x20] sm:$0xff]
    %v241 = vld [vmem:[%s6 + $0x28] sm:$0xff]
    %v242 = vld [vmem:[%s6 + $0x30] sm:$0xff]
    %v243 = vld [vmem:[%s6 + $0x38] sm:$0xff]
    %v244 = vld [vmem:[%s6 + $0x40] sm:$0xff]
    %v245 = vld [vmem:[%s6 + $0x48] sm:$0xff]
    %v246 = vld [vmem:[%s6 + $0x50] sm:$0xff]
    %v247 = vld [vmem:[%s6 + $0x58] sm:$0xff]
    %v248 = vld [vmem:[%s6 + $0x60] sm:$0xff]
    %v249 = vld [vmem:[%s6 + $0x68] sm:$0xff]
    %v250 = vld [vmem:[%s6 + $0x70] sm:$0xff]
    %v251 = vld [vmem:[%s6 + $0x78] sm:$0xff]
    %v252 = vld [vmem:[%s7] sm:$0x3]
    %v254 = vlaneseq
    %v255 = vshrl.u32 %v254, 7
    %v256 = vsub.s32 0, %v255
    %v257 = vrot.slane %v252, %v256
    %v258 = vlaneseq
    %v259 = vshrl.u32 %v258, 7
    %v260 = vsub.s32 1, %v259
    %v261 = vrot.slane %v252, %v260
    %v280 = vunpack.c.l.b16 %v236
    %v281 = vunpack.c.h.b16 %v236
    %v282 = vunpack.c.l.b16 %v237
    %v283 = vunpack.c.h.b16 %v237
    %v284 = vunpack.c.l.b16 %v238
    %v285 = vunpack.c.h.b16 %v238
    %v286 = vunpack.c.l.b16 %v239
    %v287 = vunpack.c.h.b16 %v239
    %v288 = vunpack.c.l.b16 %v240
    %v289 = vunpack.c.h.b16 %v240
    %v290 = vunpack.c.l.b16 %v241
    %v291 = vunpack.c.h.b16 %v241
    %v292 = vunpack.c.l.b16 %v242
    %v293 = vunpack.c.h.b16 %v242
    %v294 = vunpack.c.l.b16 %v243
    %v295 = vunpack.c.h.b16 %v243
    %v296 = vunpack.c.l.b16 %v244
    %v297 = vunpack.c.h.b16 %v244
    %v298 = vunpack.c.l.b16 %v245
    %v299 = vunpack.c.h.b16 %v245
    %v300 = vunpack.c.l.b16 %v246
    %v301 = vunpack.c.h.b16 %v246
    %v302 = vunpack.c.l.b16 %v247
    %v303 = vunpack.c.h.b16 %v247
    %v304 = vunpack.c.l.b16 %v248
    %v305 = vunpack.c.h.b16 %v248
    %v306 = vunpack.c.l.b16 %v249
    %v307 = vunpack.c.h.b16 %v249
    %v308 = vunpack.c.l.b16 %v250
    %v309 = vunpack.c.h.b16 %v250
    %v310 = vunpack.c.l.b16 %v251
    %v311 = vunpack.c.h.b16 %v251
    %v312 = vpack.c.b16 %v282, %v280
    %v313 = vpack.c.b16 %v283, %v281
    %v314 = vpack.c.b16 %v286, %v284
    %v315 = vpack.c.b16 %v287, %v285
    %v316 = vpack.c.b16 %v290, %v288
    %v317 = vpack.c.b16 %v291, %v289
    %v318 = vpack.c.b16 %v294, %v292
    %v319 = vpack.c.b16 %v295, %v293
    %v320 = vpack.c.b16 %v298, %v296
    %v321 = vpack.c.b16 %v299, %v297
    %v322 = vpack.c.b16 %v302, %v300
    %v323 = vpack.c.b16 %v303, %v301
    %v324 = vpack.c.b16 %v306, %v304
    %v325 = vpack.c.b16 %v307, %v305
    %v326 = vpack.c.b16 %v310, %v308
    %v327 = vpack.c.b16 %v311, %v309
    %344 = vmatprep.subr.bf16.mxu0 %v313
    %345 = vmatpush1.bf16.msra.mxu0 %v312
    %346 = vmatprep.subr.bf16.mxu0 %v315
    %347 = vmatpush1.bf16.msra.mxu0 %v314
    %348 = vmatprep.subr.bf16.mxu0 %v317
    %349 = vmatpush1.bf16.msra.mxu0 %v316
    %350 = vmatprep.subr.bf16.mxu0 %v319
    %351 = vmatpush1.bf16.msra.mxu0 %v318
    %352 = vmatprep.subr.bf16.mxu0 %v321
    %353 = vmatpush1.bf16.msra.mxu0 %v320
    %354 = vmatprep.subr.bf16.mxu0 %v323
    %355 = vmatpush1.bf16.msra.mxu0 %v322
    %356 = vmatprep.subr.bf16.mxu0 %v325
    %357 = vmatpush1.bf16.msra.mxu0 %v324
    %358 = vmatprep.subr.bf16.mxu0 %v327
    %359 = vmatpush1.bf16.msra.mxu0 %v326
    %360 = vmatprep.subr.bf16.mxu0 0
    %361 = vmatpush1.bf16.msra.mxu0 0
    %362 = vmatprep.subr.bf16.mxu0 0
    %363 = vmatpush1.bf16.msra.mxu0 0
    %364 = vmatprep.subr.bf16.mxu0 0
    %365 = vmatpush1.bf16.msra.mxu0 0
    %366 = vmatprep.subr.bf16.mxu0 0
    %367 = vmatpush1.bf16.msra.mxu0 0
    %368 = vmatprep.subr.bf16.mxu0 0
    %369 = vmatpush1.bf16.msra.mxu0 0
    %370 = vmatprep.subr.bf16.mxu0 0
    %371 = vmatpush1.bf16.msra.mxu0 0
    %372 = vmatprep.subr.bf16.mxu0 0
    %373 = vmatpush1.bf16.msra.mxu0 0
    %374 = vmatprep.subr.bf16.mxu0 0
    %375 = vmatpush1.bf16.msra.mxu0 0
    %376 = vmatprep.mubr.bf16.mxu0 0
    %377 = vmatmul.mubr.bf16.gmra.mrb[0].mxu0 %v235
    %v378 = vpop.f32.mrb[0].mxu0
    %v379 = vadd.f32 %v257, %v378
    %v380 = vpop.f32.mrb[0].mxu0
    %v381 = vadd.f32 %v261, %v380
    %v382 = vpop.f32.mrb[0].mxu0
    %v383 = vadd.f32 %v257, %v382
    %v384 = vpop.f32.mrb[0].mxu0
    %v385 = vadd.f32 %v261, %v384
    %386 = vdwg.mxu0
    %387 = vst [vmem:[%s14] sm:$0xff] %v379
    %388 = vst [vmem:[%s14 + $0x8] sm:$0xff] %v381
    %389 = vst [vmem:[%s14 + $0x10] sm:$0xff] %v383
    %390 = vst [vmem:[%s14 + $0x18] sm:$0xff] %v385
    %v391 = vld [vmem:[%s1] sm:$0xff]
    %v392 = vld [vmem:[%s1 + $0x8] sm:$0xff]
    %v393 = vmul.f32 %v381, 0.5
    %v394 = vmul.f32 %v385, 0.5
    %v395 = vmul.f32 %v393, 1.442695
    %v396 = vpow.pop %v395
    %v397 = vmul.f32 %v394, 1.442695
    %v398 = vpow.pop %v397
    %v399 = vmul.f32 %v391, %v396
    %v400 = vmul.f32 %v392, %v398
    %v401 = vadd.f32 %v379, %v399
    %v402 = vadd.f32 %v383, %v400
    %v403 = vpack.c.bf16 %v402, %v401
    %v404 = vld [vmem:[%s8] sm:$0xf]
    %v405 = vld [vmem:[%s8 + $0x4] sm:$0xf]
    %v406 = vld [vmem:[%s8 + $0x8] sm:$0xf]
    %v407 = vld [vmem:[%s8 + $0xc] sm:$0xf]
    %v408 = vld [vmem:[%s8 + $0x10] sm:$0xf]
    %v409 = vld [vmem:[%s8 + $0x14] sm:$0xf]
    %v410 = vld [vmem:[%s8 + $0x18] sm:$0xf]
    %v411 = vld [vmem:[%s8 + $0x1c] sm:$0xf]
    %v412 = vld [vmem:[%s8 + $0x20] sm:$0xf]
    %v413 = vld [vmem:[%s8 + $0x24] sm:$0xf]
    %v414 = vld [vmem:[%s8 + $0x28] sm:$0xf]
    %v415 = vld [vmem:[%s8 + $0x2c] sm:$0xf]
    %v416 = vld [vmem:[%s8 + $0x30] sm:$0xf]
    %v417 = vld [vmem:[%s8 + $0x34] sm:$0xf]
    %v418 = vld [vmem:[%s8 + $0x38] sm:$0xf]
    %v419 = vld [vmem:[%s8 + $0x3c] sm:$0xf]
    %v420 = vld [vmem:[%s9] sm:$0x1]
    %v422 = vlaneseq
    %v423 = vshrl.u32 %v422, 7
    %v424 = vsub.s32 0, %v423
    %v425 = vrot.slane %v420, %v424
    %v443 = vunpack.c.l.b16 %v404
    %v444 = vunpack.c.l.b16 %v405
    %v445 = vunpack.c.l.b16 %v406
    %v446 = vunpack.c.l.b16 %v407
    %v447 = vunpack.c.l.b16 %v408
    %v448 = vunpack.c.l.b16 %v409
    %v449 = vunpack.c.l.b16 %v410
    %v450 = vunpack.c.l.b16 %v411
    %v451 = vunpack.c.l.b16 %v412
    %v452 = vunpack.c.l.b16 %v413
    %v453 = vunpack.c.l.b16 %v414
    %v454 = vunpack.c.l.b16 %v415
    %v455 = vunpack.c.l.b16 %v416
    %v456 = vunpack.c.l.b16 %v417
    %v457 = vunpack.c.l.b16 %v418
    %v458 = vunpack.c.l.b16 %v419
    %v459 = vpack.c.b16 %v444, %v443
    %v460 = vpack.c.b16 %v446, %v445
    %v461 = vpack.c.b16 %v448, %v447
    %v462 = vpack.c.b16 %v450, %v449
    %v463 = vpack.c.b16 %v452, %v451
    %v464 = vpack.c.b16 %v454, %v453
    %v465 = vpack.c.b16 %v456, %v455
    %v466 = vpack.c.b16 %v458, %v457
    %475 = vmatprep.subr.bf16.mxu0 0
    %476 = vmatpush1.bf16.msra.mxu0 %v459
    %477 = vmatprep.subr.bf16.mxu0 0
    %478 = vmatpush1.bf16.msra.mxu0 %v460
    %479 = vmatprep.subr.bf16.mxu0 0
    %480 = vmatpush1.bf16.msra.mxu0 %v461
    %481 = vmatprep.subr.bf16.mxu0 0
    %482 = vmatpush1.bf16.msra.mxu0 %v462
    %483 = vmatprep.subr.bf16.mxu0 0
    %484 = vmatpush1.bf16.msra.mxu0 %v463
    %485 = vmatprep.subr.bf16.mxu0 0
    %486 = vmatpush1.bf16.msra.mxu0 %v464
    %487 = vmatprep.subr.bf16.mxu0 0
    %488 = vmatpush1.bf16.msra.mxu0 %v465
    %489 = vmatprep.subr.bf16.mxu0 0
    %490 = vmatpush1.bf16.msra.mxu0 %v466
    %491 = vmatprep.subr.bf16.mxu0 0
    %492 = vmatpush1.bf16.msra.mxu0 0
    %493 = vmatprep.subr.bf16.mxu0 0
    %494 = vmatpush1.bf16.msra.mxu0 0
    %495 = vmatprep.subr.bf16.mxu0 0
    %496 = vmatpush1.bf16.msra.mxu0 0
    %497 = vmatprep.subr.bf16.mxu0 0
    %498 = vmatpush1.bf16.msra.mxu0 0
    %499 = vmatprep.subr.bf16.mxu0 0
    %500 = vmatpush1.bf16.msra.mxu0 0
    %501 = vmatprep.subr.bf16.mxu0 0
    %502 = vmatpush1.bf16.msra.mxu0 0
    %503 = vmatprep.subr.bf16.mxu0 0
    %504 = vmatpush1.bf16.msra.mxu0 0
    %505 = vmatprep.subr.bf16.mxu0 0
    %506 = vmatpush1.bf16.msra.mxu0 0
    %507 = vmatprep.mubr.bf16.mxu0 0
    %508 = vmatmul.mubr.bf16.gmra.mrb[0].mxu0 %v403
    %v509 = vpop.f32.mrb[0].mxu0
    %v510 = vadd.f32 %v425, %v509
    %v511 = vpop.f32.mrb[0].mxu0
    %v512 = vpop.f32.mrb[0].mxu0
    %v513 = vadd.f32 %v425, %v512
    %v514 = vpop.f32.mrb[0].mxu0
    %515 = vdwg.mxu0
    %v516 = vtanh.pop %v510
    %v517 = vtanh.pop %v513
    %v518 = vpack.c.bf16 %v517, %v516
    %v519 = vld [vmem:[%s10] sm:$0xf]
    %v520 = vld [vmem:[%s10 + $0x4] sm:$0xf]
    %v521 = vld [vmem:[%s10 + $0x8] sm:$0xf]
    %v522 = vld [vmem:[%s10 + $0xc] sm:$0xf]
    %v523 = vld [vmem:[%s10 + $0x10] sm:$0xf]
    %v524 = vld [vmem:[%s10 + $0x14] sm:$0xf]
    %v525 = vld [vmem:[%s10 + $0x18] sm:$0xf]
    %v526 = vld [vmem:[%s10 + $0x1c] sm:$0xf]
    %v527 = vld [vmem:[%s10 + $0x20] sm:$0xf]
    %v528 = vld [vmem:[%s10 + $0x24] sm:$0xf]
    %v529 = vld [vmem:[%s10 + $0x28] sm:$0xf]
    %v530 = vld [vmem:[%s10 + $0x2c] sm:$0xf]
    %v531 = vld [vmem:[%s10 + $0x30] sm:$0xf]
    %v532 = vld [vmem:[%s10 + $0x34] sm:$0xf]
    %v533 = vld [vmem:[%s10 + $0x38] sm:$0xf]
    %v534 = vld [vmem:[%s10 + $0x3c] sm:$0xf]
    %v535 = vld [vmem:[%s11] sm:$0x1]
    %v537 = vlaneseq
    %v538 = vshrl.u32 %v537, 7
    %v539 = vsub.s32 0, %v538
    %v540 = vrot.slane %v535, %v539
    %v558 = vunpack.c.l.b16 %v519
    %v559 = vunpack.c.l.b16 %v520
    %v560 = vunpack.c.l.b16 %v521
    %v561 = vunpack.c.l.b16 %v522
    %v562 = vunpack.c.l.b16 %v523
    %v563 = vunpack.c.l.b16 %v524
    %v564 = vunpack.c.l.b16 %v525
    %v565 = vunpack.c.l.b16 %v526
    %v566 = vunpack.c.l.b16 %v527
    %v567 = vunpack.c.l.b16 %v528
    %v568 = vunpack.c.l.b16 %v529
    %v569 = vunpack.c.l.b16 %v530
    %v570 = vunpack.c.l.b16 %v531
    %v571 = vunpack.c.l.b16 %v532
    %v572 = vunpack.c.l.b16 %v533
    %v573 = vunpack.c.l.b16 %v534
    %v574 = vpack.c.b16 %v559, %v558
    %v575 = vpack.c.b16 %v561, %v560
    %v576 = vpack.c.b16 %v563, %v562
    %v577 = vpack.c.b16 %v565, %v564
    %v578 = vpack.c.b16 %v567, %v566
    %v579 = vpack.c.b16 %v569, %v568
    %v580 = vpack.c.b16 %v571, %v570
    %v581 = vpack.c.b16 %v573, %v572
    %590 = vmatprep.subr.bf16.mxu0 0
    %591 = vmatpush1.bf16.msra.mxu0 %v574
    %592 = vmatprep.subr.bf16.mxu0 0
    %593 = vmatpush1.bf16.msra.mxu0 %v575
    %594 = vmatprep.subr.bf16.mxu0 0
    %595 = vmatpush1.bf16.msra.mxu0 %v576
    %596 = vmatprep.subr.bf16.mxu0 0
    %597 = vmatpush1.bf16.msra.mxu0 %v577
    %598 = vmatprep.subr.bf16.mxu0 0
    %599 = vmatpush1.bf16.msra.mxu0 %v578
    %600 = vmatprep.subr.bf16.mxu0 0
    %601 = vmatpush1.bf16.msra.mxu0 %v579
    %602 = vmatprep.subr.bf16.mxu0 0
    %603 = vmatpush1.bf16.msra.mxu0 %v580
    %604 = vmatprep.subr.bf16.mxu0 0
    %605 = vmatpush1.bf16.msra.mxu0 %v581
    %606 = vmatprep.subr.bf16.mxu0 0
    %607 = vmatpush1.bf16.msra.mxu0 0
    %608 = vmatprep.subr.bf16.mxu0 0
    %609 = vmatpush1.bf16.msra.mxu0 0
    %610 = vmatprep.subr.bf16.mxu0 0
    %611 = vmatpush1.bf16.msra.mxu0 0
    %612 = vmatprep.subr.bf16.mxu0 0
    %613 = vmatpush1.bf16.msra.mxu0 0
    %614 = vmatprep.subr.bf16.mxu0 0
    %615 = vmatpush1.bf16.msra.mxu0 0
    %616 = vmatprep.subr.bf16.mxu0 0
    %617 = vmatpush1.bf16.msra.mxu0 0
    %618 = vmatprep.subr.bf16.mxu0 0
    %619 = vmatpush1.bf16.msra.mxu0 0
    %620 = vmatprep.subr.bf16.mxu0 0
    %621 = vmatpush1.bf16.msra.mxu0 0
    %622 = vmatprep.mubr.bf16.mxu0 0
    %623 = vmatmul.mubr.bf16.gmra.mrb[0].mxu0 %v518
    %v624 = vpop.f32.mrb[0].mxu0
    %v625 = vadd.f32 %v540, %v624
    %v626 = vpop.f32.mrb[0].mxu0
    %v627 = vpop.f32.mrb[0].mxu0
    %v628 = vadd.f32 %v540, %v627
    %v629 = vpop.f32.mrb[0].mxu0
    %630 = vdwg.mxu0
    %v631 = vtanh.pop %v625
    %v632 = vtanh.pop %v628
    %v633 = vpack.c.bf16 %v632, %v631
    %v634 = vld [vmem:[%s12] sm:$0xf]
    %v635 = vld [vmem:[%s12 + $0x4] sm:$0xf]
    %v636 = vld [vmem:[%s12 + $0x8] sm:$0xf]
    %v637 = vld [vmem:[%s12 + $0xc] sm:$0xf]
    %v638 = vld [vmem:[%s12 + $0x10] sm:$0xf]
    %v639 = vld [vmem:[%s12 + $0x14] sm:$0xf]
    %v640 = vld [vmem:[%s12 + $0x18] sm:$0xf]
    %v641 = vld [vmem:[%s12 + $0x1c] sm:$0xf]
    %v642 = vld [vmem:[%s12 + $0x20] sm:$0xf]
    %v643 = vld [vmem:[%s12 + $0x24] sm:$0xf]
    %v644 = vld [vmem:[%s12 + $0x28] sm:$0xf]
    %v645 = vld [vmem:[%s12 + $0x2c] sm:$0xf]
    %v646 = vld [vmem:[%s12 + $0x30] sm:$0xf]
    %v647 = vld [vmem:[%s12 + $0x34] sm:$0xf]
    %v648 = vld [vmem:[%s12 + $0x38] sm:$0xf]
    %v649 = vld [vmem:[%s12 + $0x3c] sm:$0xf]
    %v650 = vld [vmem:[%s13] sm:$0x1]
    %v652 = vlaneseq
    %v653 = vshrl.u32 %v652, 7
    %v654 = vsub.s32 0, %v653
    %v655 = vrot.slane %v650, %v654
    %v673 = vunpack.c.l.b16 %v634
    %v674 = vunpack.c.l.b16 %v635
    %v675 = vunpack.c.l.b16 %v636
    %v676 = vunpack.c.l.b16 %v637
    %v677 = vunpack.c.l.b16 %v638
    %v678 = vunpack.c.l.b16 %v639
    %v679 = vunpack.c.l.b16 %v640
    %v680 = vunpack.c.l.b16 %v641
    %v681 = vunpack.c.l.b16 %v642
    %v682 = vunpack.c.l.b16 %v643
    %v683 = vunpack.c.l.b16 %v644
    %v684 = vunpack.c.l.b16 %v645
    %v685 = vunpack.c.l.b16 %v646
    %v686 = vunpack.c.l.b16 %v647
    %v687 = vunpack.c.l.b16 %v648
    %v688 = vunpack.c.l.b16 %v649
    %v689 = vpack.c.b16 %v674, %v673
    %v690 = vpack.c.b16 %v676, %v675
    %v691 = vpack.c.b16 %v678, %v677
    %v692 = vpack.c.b16 %v680, %v679
    %v693 = vpack.c.b16 %v682, %v681
    %v694 = vpack.c.b16 %v684, %v683
    %v695 = vpack.c.b16 %v686, %v685
    %v696 = vpack.c.b16 %v688, %v687
    %705 = vmatprep.subr.bf16.mxu0 0
    %706 = vmatpush1.bf16.msra.mxu0 %v689
    %707 = vmatprep.subr.bf16.mxu0 0
    %708 = vmatpush1.bf16.msra.mxu0 %v690
    %709 = vmatprep.subr.bf16.mxu0 0
    %710 = vmatpush1.bf16.msra.mxu0 %v691
    %711 = vmatprep.subr.bf16.mxu0 0
    %712 = vmatpush1.bf16.msra.mxu0 %v692
    %713 = vmatprep.subr.bf16.mxu0 0
    %714 = vmatpush1.bf16.msra.mxu0 %v693
    %715 = vmatprep.subr.bf16.mxu0 0
    %716 = vmatpush1.bf16.msra.mxu0 %v694
    %717 = vmatprep.subr.bf16.mxu0 0
    %718 = vmatpush1.bf16.msra.mxu0 %v695
    %719 = vmatprep.subr.bf16.mxu0 0
    %720 = vmatpush1.bf16.msra.mxu0 %v696
    %721 = vmatprep.subr.bf16.mxu0 0
    %722 = vmatpush1.bf16.msra.mxu0 0
    %723 = vmatprep.subr.bf16.mxu0 0
    %724 = vmatpush1.bf16.msra.mxu0 0
    %725 = vmatprep.subr.bf16.mxu0 0
    %726 = vmatpush1.bf16.msra.mxu0 0
    %727 = vmatprep.subr.bf16.mxu0 0
    %728 = vmatpush1.bf16.msra.mxu0 0
    %729 = vmatprep.subr.bf16.mxu0 0
    %730 = vmatpush1.bf16.msra.mxu0 0
    %731 = vmatprep.subr.bf16.mxu0 0
    %732 = vmatpush1.bf16.msra.mxu0 0
    %733 = vmatprep.subr.bf16.mxu0 0
    %734 = vmatpush1.bf16.msra.mxu0 0
    %735 = vmatprep.subr.bf16.mxu0 0
    %736 = vmatpush1.bf16.msra.mxu0 0
    %737 = vmatprep.mubr.bf16.mxu0 0
    %738 = vmatmul.mubr.bf16.gmra.mrb[0].mxu0 %v633
    %v739 = vpop.f32.mrb[0].mxu0
    %v740 = vadd.f32 %v655, %v739
    %v741 = vpop.f32.mrb[0].mxu0
    %v742 = vpop.f32.mrb[0].mxu0
    %v743 = vadd.f32 %v655, %v742
    %v744 = vpop.f32.mrb[0].mxu0
    %745 = vdwg.mxu0
    %746 = vst [vmem:[#allocation2] sm:$0xff] %v740
    %747 = vst [vmem:[#allocation2 + $0x8] sm:$0xff] %v743
    // Predicated region
    $region58: #{vae_forward.1} parent=1 // pred_check
      _
    $region59: #{vae_forward.1} parent=1 // pred_check_branch
      %749 = sbr.rel (0) target = $region61
    $region60: #{vae_forward.1} parent=1 // pred_region
      _
    $region61: #{vae_forward.1} parent=1 // pred_fallthru
      _
    // Predicated region
    $region62: #{vae_forward.1} parent=1 // pred_check
      _
    $region63: #{vae_forward.1} parent=1 // pred_check_branch
      %751 = sbr.rel (0) target = $region65
    $region64: #{vae_forward.1} parent=1 // pred_region
      %s753 = ssub.s32 256, 256
      %754 = vsyncadd [#allocation3], %s753
      %s755 = sshll.u32 [#allocation2], 4
      %s756 = int_to_ptr.vmem [resolvable:$true] %s755
      %761 = dma.vmem_to_hbm [thread:$0]  %s756, 256, %s15, [#allocation3], 128, 128, 8
    $region65: #{vae_forward.1} parent=1 // pred_fallthru
      _
    // Predicated region
    $region66: #{vae_forward.1} parent=1 // pred_check
      _
    $region67: #{vae_forward.1} parent=1 // pred_check_branch
      %763 = sbr.rel (0) target = $region69
    $region68: #{vae_forward.1} parent=1 // pred_region
      _
    $region69: #{vae_forward.1} parent=1 // pred_fallthru
      _
    // Predicated region
    $region70: #{vae_forward.1} parent=1 // pred_check
      _
    $region71: #{vae_forward.1} parent=1 // pred_check_branch
      %765 = sbr.rel (0) target = $region73
    $region72: #{vae_forward.1} parent=1 // pred_region
      %766 = dma.done [#allocation3], 256
    $region73: #{vae_forward.1} parent=1 // pred_fallthru
      _
    %767 = vsyncpa [#allocation3], 1

</llo_original>
